<compile_context>
chip_gen: v7x
topology: tpu7x:2x2x1
jax: 0.10.0
libtpu: 0.0.40
codegen_flags: <defaults>
</compile_context>

<pallas_src>
import functools

import jax
import jax.numpy as jnp
from jax import lax
from jax.experimental import pallas as pl
from jax.experimental.pallas import tpu as pltpu

HIDDEN = 64     # nn.Linear hidden width in the reference module
_EPS = 1e-12    # F.normalize default eps


def _round_up(n, m):
  return ((n + m - 1) // m) * m


def _normalize(h):
  # F.normalize(dim=-1): v / max(||v||, eps) == v * rsqrt(max(||v||^2, eps^2))
  ss = jnp.sum(h * h, axis=-1, keepdims=True)
  return h * lax.rsqrt(jnp.maximum(ss, _EPS * _EPS))


def critic_up_kernel(in_ref, wf_ref, bf_ref, w2_ref, b2_ref, w3_ref, b3_ref,
                     out_ref, *, msg_dim, n_children):
  f32 = jnp.float32
  C, md = n_children, msg_dim
  m_w = C * md

  x = in_ref[...]                                  # (bb, m_w + S+A + C*(9+S)) bf16

  # ---- fused fc1 + attention matmul (bf16 x bf16 -> f32 on the MXU) ---------
  # Weight rows under the message lanes are zero, so the full-width packed row
  # is a valid LHS and no lane-slice copy is needed before the dot.
  front = jnp.dot(x, wf_ref[...], preferred_element_type=f32) + bf_ref[...]

  h1 = _normalize(front[:, :HIDDEN])               # fc1 + F.normalize
  logits = front[:, HIDDEN:HIDDEN + m_w]           # per-child attention logits

  # ---- softmax over the C children (static lane slices; VPU/XLU/EUP only) ---
  per_child = [logits[:, c * md:(c + 1) * md] for c in range(C)]
  mmax = per_child[0]
  for c in range(1, C):
    mmax = jnp.maximum(mmax, per_child[c])
  exps = [jnp.exp(p - mmax) for p in per_child]
  denom = exps[0]
  for c in range(1, C):
    denom = denom + exps[c]
  inv = pl.reciprocal(denom, approx=True)          # EUP slot

  m = x[:, :m_w].astype(f32)                       # messages live at lanes [0, m_w)
  m_agg = exps[0] * m[:, :md]
  for c in range(1, C):
    m_agg = m_agg + exps[c] * m[:, c * md:(c + 1) * md]
  m_agg = m_agg * inv                              # (bb, md)

  # ---- tanh(cat([h1, m])) -> fc2 (single dot) -> tanh -> fc3 -> normalize ---
  xum = jnp.tanh(jnp.concatenate([h1, m_agg], axis=-1)).astype(jnp.bfloat16)
  h2 = jnp.tanh(jnp.dot(xum, w2_ref[...], preferred_element_type=f32)
                + b2_ref[...])
  h3 = (jnp.dot(h2.astype(jnp.bfloat16), w3_ref[...],
                preferred_element_type=f32) + b3_ref[...])
  out_ref[...] = _normalize(h3).astype(out_ref.dtype)


def init_params(key, state_dim, action_dim, msg_dim):
  """Deterministic synthetic parameters. Weights stored as (in, out)."""
  ks = jax.random.split(key, 8)
  def w(k, i, o):
    return jax.random.normal(k, (i, o), jnp.float32) * 0.1
  def b(k, o):
    return jax.random.normal(k, (1, o), jnp.float32) * 0.01
  return dict(
      w1=w(ks[0], state_dim + action_dim, HIDDEN), b1=b(ks[1], HIDDEN),
      wa=w(ks[2], 9 + state_dim, msg_dim),         ba=b(ks[3], msg_dim),
      w2=w(ks[4], HIDDEN + msg_dim, HIDDEN),       b2=b(ks[5], HIDDEN),
      w3=w(ks[6], HIDDEN, msg_dim),                b3=b(ks[7], msg_dim),
  )


def _pack_params(params, n_children, msg_dim):
  """Kernel-friendly layout (precompute once in production). bf16 MXU weights.

  Packed input row layout: [msgs (C*md) | x,u (S+A) | children_states (C*(9+S))]
  Fused front weight wf (in_w, 64 + C*md):
    rows for msgs            -> 0
    rows for x,u             -> w1          (cols [0, 64))
    rows for children_states -> kron(I_C,wa) (cols [64, 64+C*md))
  """
  C, md = n_children, msg_dim
  in_xu = params["w1"].shape[0]            # S + A
  in_cs = params["wa"].shape[0]            # 9 + S
  m_w = C * md
  front_in = m_w + in_xu + C * in_cs
  front_out = HIDDEN + C * md

  wf = jnp.zeros((front_in, front_out), jnp.float32)
  wf = wf.at[m_w:m_w + in_xu, :HIDDEN].set(params["w1"])
  wf = wf.at[m_w + in_xu:, HIDDEN:].set(
      jnp.kron(jnp.eye(C, dtype=jnp.float32), params["wa"]))
  bf = jnp.concatenate([params["b1"], jnp.tile(params["ba"], (1, C))], axis=-1)

  return (wf.astype(jnp.bfloat16), bf,
          params["w2"].astype(jnp.bfloat16), params["b2"],
          params["w3"].astype(jnp.bfloat16), params["b3"])


def _choose_block_b(B, block_b):
  """Biggest 16-row-aligned tile <= block_b; keep >=2 grid steps on big B."""
  bb = min(block_b, _round_up(B, 16))
  if B <= bb and B >= 1024:
    # Single grid step but a big batch: split in two so the "parallel" axis
    # can shard across the two TensorCores of a v7x chip.
    bb = _round_up((B + 1) // 2, 16)
  return bb


def critic_up_forward(x, u, children_states, msgs, params,
                      *, block_b=2048, io_dtype=jnp.bfloat16):
  """x: (B,S), u: (B,A), children_states: (B,C,9+S), msgs: C tensors (B,md)."""
  B = x.shape[0]
  C = children_states.shape[1]
  msg_dim = params["w3"].shape[1]

  wf, bf, w2, b2, w3, b3 = _pack_params(params, C, msg_dim)
  weights = (wf, bf, w2, b2, w3, b3)

  # ONE packed bf16 activation stream: [msgs | x | u | children_states].
  packed = jnp.concatenate(
      [jnp.concatenate(msgs, axis=-1), x, u,
       children_states.reshape(B, -1)], axis=-1).astype(io_dtype)

  bb = _choose_block_b(B, block_b)
  b_pad = _round_up(B, bb)
  if b_pad != B:
    packed = jnp.pad(packed, ((0, b_pad - B), (0, 0)))
  in_w = packed.shape[1]
  grid_steps = b_pad // bb

  kernel = functools.partial(critic_up_kernel, msg_dim=msg_dim, n_children=C)

  def const_spec(a):  # loaded once, stays resident across grid steps
    return pl.BlockSpec(a.shape, lambda i: (0, 0))

  # Advisory cost estimate for XLA's scheduler.
  flops = 2 * b_pad * (in_w * wf.shape[1]
                       + w2.shape[0] * w2.shape[1]
                       + w3.shape[0] * w3.shape[1])
  transcendentals = b_pad * (HIDDEN + 3 * msg_dim + C * msg_dim + 3)
  bytes_accessed = (b_pad * (in_w + msg_dim) * 2
                    + sum(int(w.size) * w.dtype.itemsize for w in weights))

  # Rough per-step VMEM (double-buffered bf16 I/O + f32 intermediates); only
  # raise the scoped limit when the default 32 MiB would be tight (v7x has
  # 64 MiB physical per TC, v5e/v6e have 128 MiB).
  step_vmem = bb * (4 * in_w + 4 * msg_dim + 8 * 128 * 4) + (1 << 20)
  vmem_limit = (int(min(step_vmem + (16 << 20), 56 << 20))
                if step_vmem > (24 << 20) else None)

  out = pl.pallas_call(
      kernel,
      grid=(grid_steps,),
      out_shape=jax.ShapeDtypeStruct((b_pad, msg_dim), io_dtype),
      in_specs=[pl.BlockSpec((bb, in_w), lambda i: (i, 0))]
               + [const_spec(w) for w in weights],
      out_specs=pl.BlockSpec((bb, msg_dim), lambda i: (i, 0)),
      compiler_params=pltpu.CompilerParams(
          dimension_semantics=("parallel",),
          vmem_limit_bytes=vmem_limit),
      cost_estimate=pl.CostEstimate(
          flops=int(flops),
          transcendentals=int(transcendentals),
          bytes_accessed=int(bytes_accessed)),
  )(packed, *weights)

  return out[:B]


def critic_up_reference(x, u, children_states, msgs, params):
  """Pure-JAX reference mirroring the PyTorch forward."""
  eps = 1e-12
  xu = jnp.concatenate([x, u], axis=-1)
  h1 = xu @ params["w1"] + params["b1"]
  h1 = h1 / jnp.maximum(jnp.linalg.norm(h1, axis=-1, keepdims=True), eps)
  logits = jnp.einsum("bcd,dm->bcm", children_states, params["wa"]) + params["ba"]
  att = jax.nn.softmax(logits, axis=-2)
  B, C = children_states.shape[:2]
  msg_dim = params["w3"].shape[1]
  m = jnp.concatenate(msgs, axis=-1).reshape(B, C, msg_dim)
  m = jnp.sum(m * att, axis=-2)
  xum = jnp.tanh(jnp.concatenate([h1, m], axis=-1))
  h2 = jnp.tanh(xum @ params["w2"] + params["b2"])
  h3 = h2 @ params["w3"] + params["b3"]
  return h3 / jnp.maximum(jnp.linalg.norm(h3, axis=-1, keepdims=True), eps)


if __name__ == "__main__":
  B, STATE_DIM, ACTION_DIM, MSG_DIM, N_CHILDREN = 8, 16, 8, 32, 2

  key = jax.random.PRNGKey(0)
  kx, ku, kc, km, kp = jax.random.split(key, 5)

  x = jax.random.normal(kx, (B, STATE_DIM), jnp.float32)
  u = jax.random.normal(ku, (B, ACTION_DIM), jnp.float32)
  children_states = jax.random.normal(kc, (B, N_CHILDREN, 9 + STATE_DIM),
                                      jnp.float32)
  msg_keys = jax.random.split(km, N_CHILDREN)
  msgs = [jax.random.normal(k, (B, MSG_DIM), jnp.float32) for k in msg_keys]

  params = init_params(kp, STATE_DIM, ACTION_DIM, MSG_DIM)

  out = critic_up_forward(x, u, children_states, msgs, params)
  out = jax.block_until_ready(out)
  assert out.shape == (B, MSG_DIM)

  # Compare against a reference fed the same bf16-rounded activations/weights
  # the kernel consumes (bf16 I/O + bf16 MXU operands are deliberate perf
  # choices; compute/accumulation inside the kernel remains f32).
  rd = lambda a: a.astype(jnp.bfloat16).astype(jnp.float32)
  ref_params = {k: rd(v) for k, v in params.items()}
  ref = critic_up_reference(rd(x), rd(u), rd(children_states),
                            [rd(t) for t in msgs], ref_params)
  err = float(jnp.max(jnp.abs(out.astype(jnp.float32) - ref)))
  assert jnp.allclose(out.astype(jnp.float32), ref, atol=1e-2, rtol=1e-2), err

  print("KERNEL_OK")
</pallas_src>

<mosaic_0001>
module attributes {stable_mosaic.version = 11 : i64} {
  func.func @critic_up_kernel(%arg0: i32, %arg1: memref<16x138xbf16, #tpu.memory_space<vmem>>, %arg2: memref<138x128xbf16, #tpu.memory_space<vmem>>, %arg3: memref<1x128xf32, #tpu.memory_space<vmem>>, %arg4: memref<96x64xbf16, #tpu.memory_space<vmem>>, %arg5: memref<1x64xf32, #tpu.memory_space<vmem>>, %arg6: memref<64x32xbf16, #tpu.memory_space<vmem>>, %arg7: memref<1x32xf32, #tpu.memory_space<vmem>>, %arg8: memref<16x32xbf16, #tpu.memory_space<vmem>>) attributes {dimension_semantics = [#tpu.dimension_semantics<parallel>], iteration_bounds = array<i64: 1>, scalar_prefetch = 0 : i64, scratch_operands = 0 : i64, tpu.core_type = #tpu.core_type<tc>, window_params = [{transform_indices = @transform_0, window_bounds = array<i64: 16, 138>}, {pipeline_mode = #tpu.pipeline_mode<synchronous>, transform_indices = @transform_1, window_bounds = array<i64: 138, 128>}, {pipeline_mode = #tpu.pipeline_mode<synchronous>, transform_indices = @transform_2, window_bounds = array<i64: 1, 128>}, {pipeline_mode = #tpu.pipeline_mode<synchronous>, transform_indices = @transform_3, window_bounds = array<i64: 96, 64>}, {pipeline_mode = #tpu.pipeline_mode<synchronous>, transform_indices = @transform_4, window_bounds = array<i64: 1, 64>}, {pipeline_mode = #tpu.pipeline_mode<synchronous>, transform_indices = @transform_5, window_bounds = array<i64: 64, 32>}, {pipeline_mode = #tpu.pipeline_mode<synchronous>, transform_indices = @transform_6, window_bounds = array<i64: 1, 32>}, {transform_indices = @transform_7, window_bounds = array<i64: 16, 32>}]} {
    %c0 = arith.constant 0 : index
    %c0_0 = arith.constant 0 : index
    %0 = vector.load %arg1[%c0, %c0_0] : memref<16x138xbf16, #tpu.memory_space<vmem>>, vector<16x138xbf16>
    %c0_1 = arith.constant 0 : index
    %c0_2 = arith.constant 0 : index
    %1 = vector.load %arg2[%c0_1, %c0_2] : memref<138x128xbf16, #tpu.memory_space<vmem>>, vector<138x128xbf16>
    %cst = arith.constant dense<0.000000e+00> : vector<16x128xf32>
    %2 = tpu.matmul %0, %1, %cst {dimension_numbers = #tpu.dot_dimension_numbers<[1], [0], [0], [1], [0, 0, 1, 1], [], []>} : vector<16x138xbf16>, vector<138x128xbf16>, vector<16x128xf32> -> vector<16x128xf32>
    %c0_3 = arith.constant 0 : index
    %c0_4 = arith.constant 0 : index
    %3 = vector.load %arg3[%c0_3, %c0_4] : memref<1x128xf32, #tpu.memory_space<vmem>>, vector<1x128xf32>
    %4 = vector.broadcast %3 : vector<1x128xf32> to vector<16x128xf32>
    %5 = arith.addf %2, %4 : vector<16x128xf32>
    %6 = vector.extract_strided_slice %5 {offsets = [0, 0], sizes = [16, 64], strides = [1, 1]} : vector<16x128xf32> to vector<16x64xf32>
    %7 = arith.mulf %6, %6 : vector<16x64xf32>
    %cst_5 = arith.constant dense<0.000000e+00> : vector<16xf32>
    %8 = vector.multi_reduction <add>, %7, %cst_5 [1] : vector<16x64xf32> to vector<16xf32>
    %9 = vector.shape_cast %8 : vector<16xf32> to vector<16x1xf32>
    %cst_6 = arith.constant 1.000000e-24 : f32
    %10 = vector.broadcast %cst_6 : f32 to vector<16x1xf32>
    %11 = arith.maximumf %9, %10 : vector<16x1xf32>
    %12 = math.rsqrt %11 : vector<16x1xf32>
    %13 = vector.broadcast %12 : vector<16x1xf32> to vector<16x64xf32>
    %14 = arith.mulf %6, %13 : vector<16x64xf32>
    %15 = vector.extract_strided_slice %5 {offsets = [0, 64], sizes = [16, 64], strides = [1, 1]} : vector<16x128xf32> to vector<16x64xf32>
    %16 = vector.extract_strided_slice %15 {offsets = [0, 0], sizes = [16, 32], strides = [1, 1]} : vector<16x64xf32> to vector<16x32xf32>
    %17 = vector.extract_strided_slice %15 {offsets = [0, 32], sizes = [16, 32], strides = [1, 1]} : vector<16x64xf32> to vector<16x32xf32>
    %18 = arith.maximumf %16, %17 : vector<16x32xf32>
    %19 = arith.subf %16, %18 : vector<16x32xf32>
    %20 = math.exp %19 : vector<16x32xf32>
    %21 = arith.subf %17, %18 : vector<16x32xf32>
    %22 = math.exp %21 : vector<16x32xf32>
    %23 = arith.addf %20, %22 : vector<16x32xf32>
    %24 = tpu.reciprocal %23 {approx = true} : vector<16x32xf32> -> vector<16x32xf32>
    %25 = vector.extract_strided_slice %0 {offsets = [0, 0], sizes = [16, 64], strides = [1, 1]} : vector<16x138xbf16> to vector<16x64xbf16>
    %26 = arith.extf %25 : vector<16x64xbf16> to vector<16x64xf32>
    %27 = vector.extract_strided_slice %26 {offsets = [0, 0], sizes = [16, 32], strides = [1, 1]} : vector<16x64xf32> to vector<16x32xf32>
    %28 = arith.mulf %20, %27 : vector<16x32xf32>
    %29 = vector.extract_strided_slice %26 {offsets = [0, 32], sizes = [16, 32], strides = [1, 1]} : vector<16x64xf32> to vector<16x32xf32>
    %30 = arith.mulf %22, %29 : vector<16x32xf32>
    %31 = arith.addf %28, %30 : vector<16x32xf32>
    %32 = arith.mulf %31, %24 : vector<16x32xf32>
    %33 = tpu.concatenate %14, %32 in 1 : vector<16x64xf32>, vector<16x32xf32> -> vector<16x96xf32>
    %34 = math.tanh %33 : vector<16x96xf32>
    %35 = arith.truncf %34 : vector<16x96xf32> to vector<16x96xbf16>
    %c0_7 = arith.constant 0 : index
    %c0_8 = arith.constant 0 : index
    %36 = vector.load %arg4[%c0_7, %c0_8] : memref<96x64xbf16, #tpu.memory_space<vmem>>, vector<96x64xbf16>
    %cst_9 = arith.constant dense<0.000000e+00> : vector<16x64xf32>
    %37 = tpu.matmul %35, %36, %cst_9 {dimension_numbers = #tpu.dot_dimension_numbers<[1], [0], [0], [1], [0, 0, 1, 1], [], []>} : vector<16x96xbf16>, vector<96x64xbf16>, vector<16x64xf32> -> vector<16x64xf32>
    %c0_10 = arith.constant 0 : index
    %c0_11 = arith.constant 0 : index
    %38 = vector.load %arg5[%c0_10, %c0_11] : memref<1x64xf32, #tpu.memory_space<vmem>>, vector<1x64xf32>
    %39 = vector.broadcast %38 : vector<1x64xf32> to vector<16x64xf32>
    %40 = arith.addf %37, %39 : vector<16x64xf32>
    %41 = math.tanh %40 : vector<16x64xf32>
    %42 = arith.truncf %41 : vector<16x64xf32> to vector<16x64xbf16>
    %c0_12 = arith.constant 0 : index
    %c0_13 = arith.constant 0 : index
    %43 = vector.load %arg6[%c0_12, %c0_13] : memref<64x32xbf16, #tpu.memory_space<vmem>>, vector<64x32xbf16>
    %cst_14 = arith.constant dense<0.000000e+00> : vector<16x32xf32>
    %44 = tpu.matmul %42, %43, %cst_14 {dimension_numbers = #tpu.dot_dimension_numbers<[1], [0], [0], [1], [0, 0, 1, 1], [], []>} : vector<16x64xbf16>, vector<64x32xbf16>, vector<16x32xf32> -> vector<16x32xf32>
    %c0_15 = arith.constant 0 : index
    %c0_16 = arith.constant 0 : index
    %45 = vector.load %arg7[%c0_15, %c0_16] : memref<1x32xf32, #tpu.memory_space<vmem>>, vector<1x32xf32>
    %46 = vector.broadcast %45 : vector<1x32xf32> to vector<16x32xf32>
    %47 = arith.addf %44, %46 : vector<16x32xf32>
    %48 = arith.mulf %47, %47 : vector<16x32xf32>
    %cst_17 = arith.constant dense<0.000000e+00> : vector<16xf32>
    %49 = vector.multi_reduction <add>, %48, %cst_17 [1] : vector<16x32xf32> to vector<16xf32>
    %50 = vector.shape_cast %49 : vector<16xf32> to vector<16x1xf32>
    %cst_18 = arith.constant 1.000000e-24 : f32
    %51 = vector.broadcast %cst_18 : f32 to vector<16x1xf32>
    %52 = arith.maximumf %50, %51 : vector<16x1xf32>
    %53 = math.rsqrt %52 : vector<16x1xf32>
    %54 = vector.broadcast %53 : vector<16x1xf32> to vector<16x32xf32>
    %55 = arith.mulf %47, %54 : vector<16x32xf32>
    %56 = arith.truncf %55 : vector<16x32xf32> to vector<16x32xbf16>
    %c0_19 = arith.constant 0 : index
    %c0_20 = arith.constant 0 : index
    %57 = vector.load %arg8[%c0_19, %c0_20] : memref<16x32xbf16, #tpu.memory_space<vmem>>, vector<16x32xbf16>
    tpu.vector_store %arg8[%c0_19, %c0_20], %56 {strides = array<i32>} : memref<16x32xbf16, #tpu.memory_space<vmem>>, vector<16x32xbf16>,
    return
  }
  func.func @transform_0(%arg0: i32) -> (i32, i32) {
    %c0_i32 = arith.constant 0 : i32
    %c0_i32_0 = arith.constant 0 : i32
    return %arg0, %c0_i32 : i32, i32
  }
  func.func @transform_1(%arg0: i32) -> (i32, i32) {
    %c0_i32 = arith.constant 0 : i32
    %c0_i32_0 = arith.constant 0 : i32
    %c0_i32_1 = arith.constant 0 : i32
    return %c0_i32, %c0_i32_0 : i32, i32
  }
  func.func @transform_2(%arg0: i32) -> (i32, i32) {
    %c0_i32 = arith.constant 0 : i32
    %c0_i32_0 = arith.constant 0 : i32
    %c0_i32_1 = arith.constant 0 : i32
    return %c0_i32, %c0_i32_0 : i32, i32
  }
  func.func @transform_3(%arg0: i32) -> (i32, i32) {
    %c0_i32 = arith.constant 0 : i32
    %c0_i32_0 = arith.constant 0 : i32
    %c0_i32_1 = arith.constant 0 : i32
    return %c0_i32, %c0_i32_0 : i32, i32
  }
  func.func @transform_4(%arg0: i32) -> (i32, i32) {
    %c0_i32 = arith.constant 0 : i32
    %c0_i32_0 = arith.constant 0 : i32
    %c0_i32_1 = arith.constant 0 : i32
    return %c0_i32, %c0_i32_0 : i32, i32
  }
  func.func @transform_5(%arg0: i32) -> (i32, i32) {
    %c0_i32 = arith.constant 0 : i32
    %c0_i32_0 = arith.constant 0 : i32
    %c0_i32_1 = arith.constant 0 : i32
    return %c0_i32, %c0_i32_0 : i32, i32
  }
  func.func @transform_6(%arg0: i32) -> (i32, i32) {
    %c0_i32 = arith.constant 0 : i32
    %c0_i32_0 = arith.constant 0 : i32
    %c0_i32_1 = arith.constant 0 : i32
    return %c0_i32, %c0_i32_0 : i32, i32
  }
  func.func @transform_7(%arg0: i32) -> (i32, i32) {
    %c0_i32 = arith.constant 0 : i32
    %c0_i32_0 = arith.constant 0 : i32
    return %arg0, %c0_i32 : i32, i32
  }
}

</mosaic_0001>

<llo_original>
// kernel: tpu_custom_call.1
$region0: #{tpu_custom_call.1}
  #allocation0 [shape = 'u32[]', space=smem, size = 0x4, offset = 0x4, fixed_abs, tag = 'smem constant byte address 0x4 - core index']
  #allocation1 [shape = 'u32[144,128]{1,0:T(1,128)}', space=vmem, size = 0x12000, scoped, tag = 'internal scratch']
  %s0 = inlined_call_operand.vmem [shape: bf16[16,138], index: 0, kind: input, shape index: {}]
  %s1 = inlined_call_operand.vmem [shape: bf16[138,128], index: 1, kind: input, shape index: {}]
  %s2 = inlined_call_operand.vmem [shape: f32[1,128], index: 2, kind: input, shape index: {}]
  %s3 = inlined_call_operand.vmem [shape: bf16[96,64], index: 3, kind: input, shape index: {}]
  %s4 = inlined_call_operand.vmem [shape: f32[1,64], index: 4, kind: input, shape index: {}]
  %s5 = inlined_call_operand.vmem [shape: bf16[64,32], index: 5, kind: input, shape index: {}]
  %s6 = inlined_call_operand.vmem [shape: f32[1,32], index: 6, kind: input, shape index: {}]
  %s7 = inlined_call_operand.hbm [shape: bf16[16,32], index: 7, kind: output, shape index: {}]
  %s8 = sld [smem:[#allocation0]]
  $region38: #{tpu_custom_call.1} parent=0
    _
  %s10 = ssub.s32 1, %s8
  %s11 = scalar_select 0, %s10, %s8
  $region1: #{tpu_custom_call.1} parent=0
    #allocation2 [shape = 'u8[4096]{0}', space=vmem, size = 0x1000, scoped, tag = 'output window, operand 0, single buffered']
    #allocation3 [shape = 's32[1]{0}', space=sflag, size = 0x4, scoped, tag = 'scoped memory for tpu_custom_call.1']
    %12 = vsyncpa [#allocation3], 0
    // Predicated region
    $region2: #{tpu_custom_call.1} parent=1 // pred_check
      _
    $region3: #{tpu_custom_call.1} parent=1 // pred_check_branch
      %14 = sbr.rel (0) target = $region5
    $region4: #{tpu_custom_call.1} parent=1 // pred_region
      _
    $region5: #{tpu_custom_call.1} parent=1 // pred_fallthru
      _
    // Predicated region
    $region6: #{tpu_custom_call.1} parent=1 // pred_check
      _
    $region7: #{tpu_custom_call.1} parent=1 // pred_check_branch
      %16 = sbr.rel (0) target = $region9
    $region8: #{tpu_custom_call.1} parent=1 // pred_region
      _
    $region9: #{tpu_custom_call.1} parent=1 // pred_fallthru
      _
    // Predicated region
    $region10: #{tpu_custom_call.1} parent=1 // pred_check
      _
    $region11: #{tpu_custom_call.1} parent=1 // pred_check_branch
      %18 = sbr.rel (0) target = $region13
    $region12: #{tpu_custom_call.1} parent=1 // pred_region
      _
    $region13: #{tpu_custom_call.1} parent=1 // pred_fallthru
      _
    // Predicated region
    $region14: #{tpu_custom_call.1} parent=1 // pred_check
      _
    $region15: #{tpu_custom_call.1} parent=1 // pred_check_branch
      %20 = sbr.rel (0) target = $region17
    $region16: #{tpu_custom_call.1} parent=1 // pred_region
      _
    $region17: #{tpu_custom_call.1} parent=1 // pred_fallthru
      _
    // Predicated region
    $region18: #{tpu_custom_call.1} parent=1 // pred_check
      _
    $region19: #{tpu_custom_call.1} parent=1 // pred_check_branch
      %22 = sbr.rel (0) target = $region21
    $region20: #{tpu_custom_call.1} parent=1 // pred_region
      _
    $region21: #{tpu_custom_call.1} parent=1 // pred_fallthru
      _
    // Predicated region
    $region22: #{tpu_custom_call.1} parent=1 // pred_check
      _
    $region23: #{tpu_custom_call.1} parent=1 // pred_check_branch
      %24 = sbr.rel (0) target = $region25
    $region24: #{tpu_custom_call.1} parent=1 // pred_region
      _
    $region25: #{tpu_custom_call.1} parent=1 // pred_fallthru
      _
    // Predicated region
    $region26: #{tpu_custom_call.1} parent=1 // pred_check
      _
    $region27: #{tpu_custom_call.1} parent=1 // pred_check_branch
      %26 = sbr.rel (0) target = $region29
    $region28: #{tpu_custom_call.1} parent=1 // pred_region
      _
    $region29: #{tpu_custom_call.1} parent=1 // pred_fallthru
      _
    %v28 = vld [vmem:[%s0] sm:$0xff]
    %v29 = vld [vmem:[%s0 + $0x8] sm:$0xff]
    %v30 = vld [vmem:[%s1] sm:$0xf]
    %v31 = vld [vmem:[%s1 + $0x4] sm:$0xf]
    %v32 = vld [vmem:[%s1 + $0x8] sm:$0xf]
    %v33 = vld [vmem:[%s1 + $0xc] sm:$0xf]
    %v34 = vld [vmem:[%s1 + $0x10] sm:$0xf]
    %v35 = vld [vmem:[%s1 + $0x14] sm:$0xf]
    %v36 = vld [vmem:[%s1 + $0x18] sm:$0xf]
    %v37 = vld [vmem:[%s1 + $0x1c] sm:$0xf]
    %v38 = vld [vmem:[%s1 + $0x20] sm:$0xf]
    %v39 = vld [vmem:[%s1 + $0x24] sm:$0xf]
    %v40 = vld [vmem:[%s1 + $0x28] sm:$0xf]
    %v41 = vld [vmem:[%s1 + $0x2c] sm:$0xf]
    %v42 = vld [vmem:[%s1 + $0x30] sm:$0xf]
    %v43 = vld [vmem:[%s1 + $0x34] sm:$0xf]
    %v44 = vld [vmem:[%s1 + $0x38] sm:$0xf]
    %v45 = vld [vmem:[%s1 + $0x3c] sm:$0xf]
    %v46 = vld [vmem:[%s1 + $0x40] sm:$0xf]
    %v47 = vld [vmem:[%s1 + $0x44] sm:$0x1]
    %v48 = vld [vmem:[%s2] sm:$0x1]
    %v50 = vlaneseq
    %v51 = vshrl.u32 %v50, 7
    %v52 = vsub.s32 0, %v51
    %v53 = vrot.slane %v48, %v52
    %v57 = vunpack.c.l.b16 %v28
    %v58 = vunpack.c.h.b16 %v28
    %v59 = vunpack.c.l.b16 %v29
    %v60 = vunpack.c.h.b16 %v29
    %v61 = vpack.c.b16 %v59, %v57
    %v62 = vpack.c.b16 %v60, %v58
    %v82 = vunpack.c.l.b16 %v30
    %v83 = vunpack.c.l.b16 %v31
    %v84 = vunpack.c.l.b16 %v32
    %v85 = vunpack.c.l.b16 %v33
    %v86 = vunpack.c.l.b16 %v34
    %v87 = vunpack.c.l.b16 %v35
    %v88 = vunpack.c.l.b16 %v36
    %v89 = vunpack.c.l.b16 %v37
    %v90 = vunpack.c.l.b16 %v38
    %v91 = vunpack.c.l.b16 %v39
    %v92 = vunpack.c.l.b16 %v40
    %v93 = vunpack.c.l.b16 %v41
    %v94 = vunpack.c.l.b16 %v42
    %v95 = vunpack.c.l.b16 %v43
    %v96 = vunpack.c.l.b16 %v44
    %v97 = vunpack.c.l.b16 %v45
    %v98 = vunpack.c.l.b16 %v46
    %v99 = vunpack.c.l.b16 %v47
    %v100 = vpack.c.b16 %v83, %v82
    %v101 = vpack.c.b16 %v85, %v84
    %v102 = vpack.c.b16 %v87, %v86
    %v103 = vpack.c.b16 %v89, %v88
    %v104 = vpack.c.b16 %v91, %v90
    %v105 = vpack.c.b16 %v93, %v92
    %v106 = vpack.c.b16 %v95, %v94
    %v107 = vpack.c.b16 %v97, %v96
    %v108 = vpack.c.b16 %v99, %v98
    %vm117 = vcmask 80896
    %v119 = vsel %vm117, %v62, 0
    %vm121 = vcmask 1044480
    %v123 = vsel %vm121, %v108, 0
    %125 = vmatprep.subr.bf16.mxu0 0
    %126 = vmatpush1.bf16.msra.mxu0 %v100
    %127 = vmatprep.subr.bf16.mxu0 0
    %128 = vmatpush1.bf16.msra.mxu0 %v101
    %129 = vmatprep.subr.bf16.mxu0 0
    %130 = vmatpush1.bf16.msra.mxu0 %v102
    %131 = vmatprep.subr.bf16.mxu0 0
    %132 = vmatpush1.bf16.msra.mxu0 %v103
    %133 = vmatprep.subr.bf16.mxu0 0
    %134 = vmatpush1.bf16.msra.mxu0 %v104
    %135 = vmatprep.subr.bf16.mxu0 0
    %136 = vmatpush1.bf16.msra.mxu0 %v105
    %137 = vmatprep.subr.bf16.mxu0 0
    %138 = vmatpush1.bf16.msra.mxu0 %v106
    %139 = vmatprep.subr.bf16.mxu0 0
    %140 = vmatpush1.bf16.msra.mxu0 %v107
    %141 = vmatprep.subr.bf16.mxu0 0
    %142 = vmatpush1.bf16.msra.mxu0 %v123
    %143 = vmatprep.subr.bf16.mxu0 0
    %144 = vmatpush1.bf16.msra.mxu0 0
    %145 = vmatprep.subr.bf16.mxu0 0
    %146 = vmatpush1.bf16.msra.mxu0 0
    %147 = vmatprep.subr.bf16.mxu0 0
    %148 = vmatpush1.bf16.msra.mxu0 0
    %149 = vmatprep.subr.bf16.mxu0 0
    %150 = vmatpush1.bf16.msra.mxu0 0
    %151 = vmatprep.subr.bf16.mxu0 0
    %152 = vmatpush1.bf16.msra.mxu0 0
    %153 = vmatprep.subr.bf16.mxu0 0
    %154 = vmatpush1.bf16.msra.mxu0 0
    %155 = vmatprep.subr.bf16.mxu0 0
    %156 = vmatpush1.bf16.msra.mxu0 0
    %157 = vmatprep.mubr.bf16.mxu0 %v119
    %158 = vmatmul.mubr.bf16.gmra.mrb[0].mxu0 %v61
    %v159 = vpop.f32.mrb[0].mxu0
    %v160 = vadd.f32 %v53, %v159
    %v161 = vpop.f32.mrb[0].mxu0
    %v162 = vpop.f32.mrb[0].mxu0
    %v163 = vadd.f32 %v53, %v162
    %v164 = vpop.f32.mrb[0].mxu0
    %165 = vdwg.mxu0
    %v166 = vmul.f32 %v160, %v160
    %v167 = vmul.f32 %v163, %v163
    %vm168 = vcmask 523264
    %v169 = vsel %vm168, %v166, 0.0
    %170 = vadd.xlane.f32.xlu0 %v169
    %v171 = vpop.xlane.xlu0 %170
    %v172 = vsel %vm168, %v167, 0.0
    %173 = vadd.xlane.f32.xlu0 %v172
    %v174 = vpop.xlane.xlu0 %173
    %v175 = vmax.f32 %v171, 1e-24
    %v176 = vmax.f32 %v174, 1e-24
    %v177 = vrsqrt.pop %v175
    %v178 = vrsqrt.pop %v176
    %v179 = vmul.f32 %v160, %v177
    %v180 = vmul.f32 %v163, %v178
    %183 = vrot.lane.b32.xlu0 %v160, 96
    %v184 = vpop.permute.xlu0 %183
    %185 = vrot.lane.b32.xlu0 %v163, 96
    %v186 = vpop.permute.xlu0 %185
    %v189 = vmax.f32 %v160, %v184
    %v190 = vmax.f32 %v163, %v186
    %v191 = vsub.f32 %v160, %v189
    %v192 = vsub.f32 %v163, %v190
    %v193 = vmul.f32 %v191, 1.442695
    %v194 = vpow.pop %v193
    %v195 = vmul.f32 %v192, 1.442695
    %v196 = vpow.pop %v195
    %199 = vrot.lane.b32.xlu0 %v189, 32
    %v200 = vpop.permute.xlu0 %199
    %201 = vrot.lane.b32.xlu0 %v190, 32
    %v202 = vpop.permute.xlu0 %201
    %v205 = vsub.f32 %v160, %v200
    %v206 = vsub.f32 %v163, %v202
    %v207 = vmul.f32 %v205, 1.442695
    %v208 = vpow.pop %v207
    %v209 = vmul.f32 %v206, 1.442695
    %v210 = vpow.pop %v209
    %213 = vrot.lane.b32.xlu0 %v208, 96
    %v214 = vpop.permute.xlu0 %213
    %215 = vrot.lane.b32.xlu0 %v210, 96
    %v216 = vpop.permute.xlu0 %215
    %v219 = vadd.f32 %v194, %v214
    %v220 = vadd.f32 %v196, %v216
    %v221 = vrcp.pop %v219
    %v222 = vrcp.pop %v220
    %v223 = vunpack.c.l.bf16 %v28
    %v224 = vunpack.c.l.bf16 %v29
    %227 = vrot.lane.b32.xlu0 %v223, 64
    %v228 = vpop.permute.xlu0 %227
    %229 = vrot.lane.b32.xlu0 %v224, 64
    %v230 = vpop.permute.xlu0 %229
    %v233 = vmul.f32 %v194, %v228
    %v234 = vmul.f32 %v196, %v230
    %v235 = vmul.f32 %v208, %v228
    %v236 = vmul.f32 %v210, %v230
    %239 = vrot.lane.b32.xlu0 %v235, 96
    %v240 = vpop.permute.xlu0 %239
    %241 = vrot.lane.b32.xlu0 %v236, 96
    %v242 = vpop.permute.xlu0 %241
    %v245 = vadd.f32 %v233, %v240
    %v246 = vadd.f32 %v234, %v242
    %v247 = vmul.f32 %v245, %v221
    %v248 = vmul.f32 %v246, %v222
    %v249 = vsel %vm168, %v179, %v247
    %v250 = vsel %vm168, %v180, %v248
    %v251 = vtanh.pop %v249
    %v252 = vtanh.pop %v250
    %v253 = vpack.c.bf16 %v252, %v251
    %v254 = vld [vmem:[%s3] sm:$0xf]
    %v255 = vld [vmem:[%s3 + $0x4] sm:$0xf]
    %v256 = vld [vmem:[%s3 + $0x8] sm:$0xf]
    %v257 = vld [vmem:[%s3 + $0xc] sm:$0xf]
    %v258 = vld [vmem:[%s3 + $0x10] sm:$0xf]
    %v259 = vld [vmem:[%s3 + $0x14] sm:$0xf]
    %v260 = vld [vmem:[%s3 + $0x18] sm:$0xf]
    %v261 = vld [vmem:[%s3 + $0x1c] sm:$0xf]
    %v262 = vld [vmem:[%s3 + $0x20] sm:$0xf]
    %v263 = vld [vmem:[%s3 + $0x24] sm:$0xf]
    %v264 = vld [vmem:[%s3 + $0x28] sm:$0xf]
    %v265 = vld [vmem:[%s3 + $0x2c] sm:$0xf]
    %v266 = vld [vmem:[%s4] sm:$0x1]
    %v268 = vlaneseq
    %v269 = vshrl.u32 %v268, 7
    %v270 = vsub.s32 0, %v269
    %v271 = vrot.slane %v266, %v270
    %v285 = vunpack.c.l.b16 %v254
    %v286 = vunpack.c.l.b16 %v255
    %v287 = vunpack.c.l.b16 %v256
    %v288 = vunpack.c.l.b16 %v257
    %v289 = vunpack.c.l.b16 %v258
    %v290 = vunpack.c.l.b16 %v259
    %v291 = vunpack.c.l.b16 %v260
    %v292 = vunpack.c.l.b16 %v261
    %v293 = vunpack.c.l.b16 %v262
    %v294 = vunpack.c.l.b16 %v263
    %v295 = vunpack.c.l.b16 %v264
    %v296 = vunpack.c.l.b16 %v265
    %v297 = vpack.c.b16 %v286, %v285
    %v298 = vpack.c.b16 %v288, %v287
    %v299 = vpack.c.b16 %v290, %v289
    %v300 = vpack.c.b16 %v292, %v291
    %v301 = vpack.c.b16 %v294, %v293
    %v302 = vpack.c.b16 %v296, %v295
    %vm309 = vcmask 785408
    %v311 = vsel %vm309, %v253, 0
    %313 = vmatprep.subr.bf16.mxu0 0
    %314 = vmatpush1.bf16.msra.mxu0 %v297
    %315 = vmatprep.subr.bf16.mxu0 0
    %316 = vmatpush1.bf16.msra.mxu0 %v298
    %317 = vmatprep.subr.bf16.mxu0 0
    %318 = vmatpush1.bf16.msra.mxu0 %v299
    %319 = vmatprep.subr.bf16.mxu0 0
    %320 = vmatpush1.bf16.msra.mxu0 %v300
    %321 = vmatprep.subr.bf16.mxu0 0
    %322 = vmatpush1.bf16.msra.mxu0 %v301
    %323 = vmatprep.subr.bf16.mxu0 0
    %324 = vmatpush1.bf16.msra.mxu0 %v302
    %325 = vmatprep.subr.bf16.mxu0 0
    %326 = vmatpush1.bf16.msra.mxu0 0
    %327 = vmatprep.subr.bf16.mxu0 0
    %328 = vmatpush1.bf16.msra.mxu0 0
    %329 = vmatprep.subr.bf16.mxu0 0
    %330 = vmatpush1.bf16.msra.mxu0 0
    %331 = vmatprep.subr.bf16.mxu0 0
    %332 = vmatpush1.bf16.msra.mxu0 0
    %333 = vmatprep.subr.bf16.mxu0 0
    %334 = vmatpush1.bf16.msra.mxu0 0
    %335 = vmatprep.subr.bf16.mxu0 0
    %336 = vmatpush1.bf16.msra.mxu0 0
    %337 = vmatprep.subr.bf16.mxu0 0
    %338 = vmatpush1.bf16.msra.mxu0 0
    %339 = vmatprep.subr.bf16.mxu0 0
    %340 = vmatpush1.bf16.msra.mxu0 0
    %341 = vmatprep.subr.bf16.mxu0 0
    %342 = vmatpush1.bf16.msra.mxu0 0
    %343 = vmatprep.subr.bf16.mxu0 0
    %344 = vmatpush1.bf16.msra.mxu0 0
    %345 = vmatprep.mubr.bf16.mxu0 0
    %346 = vmatmul.mubr.bf16.gmra.mrb[0].mxu0 %v311
    %v347 = vpop.f32.mrb[0].mxu0
    %v348 = vadd.f32 %v271, %v347
    %v349 = vpop.f32.mrb[0].mxu0
    %v350 = vpop.f32.mrb[0].mxu0
    %v351 = vadd.f32 %v271, %v350
    %v352 = vpop.f32.mrb[0].mxu0
    %353 = vdwg.mxu0
    %v354 = vtanh.pop %v348
    %v355 = vtanh.pop %v351
    %v356 = vpack.c.bf16 %v355, %v354
    %v357 = vld [vmem:[%s5] sm:$0xf]
    %v358 = vld [vmem:[%s5 + $0x4] sm:$0xf]
    %v359 = vld [vmem:[%s5 + $0x8] sm:$0xf]
    %v360 = vld [vmem:[%s5 + $0xc] sm:$0xf]
    %v361 = vld [vmem:[%s5 + $0x10] sm:$0xf]
    %v362 = vld [vmem:[%s5 + $0x14] sm:$0xf]
    %v363 = vld [vmem:[%s5 + $0x18] sm:$0xf]
    %v364 = vld [vmem:[%s5 + $0x1c] sm:$0xf]
    %v365 = vld [vmem:[%s6] sm:$0x1]
    %v367 = vlaneseq
    %v368 = vshrl.u32 %v367, 7
    %v369 = vsub.s32 0, %v368
    %v370 = vrot.slane %v365, %v369
    %v380 = vunpack.c.l.b16 %v357
    %v381 = vunpack.c.l.b16 %v358
    %v382 = vunpack.c.l.b16 %v359
    %v383 = vunpack.c.l.b16 %v360
    %v384 = vunpack.c.l.b16 %v361
    %v385 = vunpack.c.l.b16 %v362
    %v386 = vunpack.c.l.b16 %v363
    %v387 = vunpack.c.l.b16 %v364
    %v388 = vpack.c.b16 %v381, %v380
    %v389 = vpack.c.b16 %v383, %v382
    %v390 = vpack.c.b16 %v385, %v384
    %v391 = vpack.c.b16 %v387, %v386
    %v397 = vsel %vm168, %v356, 0
    %399 = vmatprep.subr.bf16.mxu0 0
    %400 = vmatpush1.bf16.msra.mxu0 %v388
    %401 = vmatprep.subr.bf16.mxu0 0
    %402 = vmatpush1.bf16.msra.mxu0 %v389
    %403 = vmatprep.subr.bf16.mxu0 0
    %404 = vmatpush1.bf16.msra.mxu0 %v390
    %405 = vmatprep.subr.bf16.mxu0 0
    %406 = vmatpush1.bf16.msra.mxu0 %v391
    %407 = vmatprep.subr.bf16.mxu0 0
    %408 = vmatpush1.bf16.msra.mxu0 0
    %409 = vmatprep.subr.bf16.mxu0 0
    %410 = vmatpush1.bf16.msra.mxu0 0
    %411 = vmatprep.subr.bf16.mxu0 0
    %412 = vmatpush1.bf16.msra.mxu0 0
    %413 = vmatprep.subr.bf16.mxu0 0
    %414 = vmatpush1.bf16.msra.mxu0 0
    %415 = vmatprep.subr.bf16.mxu0 0
    %416 = vmatpush1.bf16.msra.mxu0 0
    %417 = vmatprep.subr.bf16.mxu0 0
    %418 = vmatpush1.bf16.msra.mxu0 0
    %419 = vmatprep.subr.bf16.mxu0 0
    %420 = vmatpush1.bf16.msra.mxu0 0
    %421 = vmatprep.subr.bf16.mxu0 0
    %422 = vmatpush1.bf16.msra.mxu0 0
    %423 = vmatprep.subr.bf16.mxu0 0
    %424 = vmatpush1.bf16.msra.mxu0 0
    %425 = vmatprep.subr.bf16.mxu0 0
    %426 = vmatpush1.bf16.msra.mxu0 0
    %427 = vmatprep.subr.bf16.mxu0 0
    %428 = vmatpush1.bf16.msra.mxu0 0
    %429 = vmatprep.subr.bf16.mxu0 0
    %430 = vmatpush1.bf16.msra.mxu0 0
    %431 = vmatprep.mubr.bf16.mxu0 0
    %432 = vmatmul.mubr.bf16.gmra.mrb[0].mxu0 %v397
    %v433 = vpop.f32.mrb[0].mxu0
    %v434 = vadd.f32 %v370, %v433
    %v435 = vpop.f32.mrb[0].mxu0
    %v436 = vpop.f32.mrb[0].mxu0
    %v437 = vadd.f32 %v370, %v436
    %v438 = vpop.f32.mrb[0].mxu0
    %439 = vdwg.mxu0
    %v440 = vmul.f32 %v434, %v434
    %v441 = vmul.f32 %v437, %v437
    %vm442 = vcmask 261120
    %v443 = vsel %vm442, %v440, 0.0
    %444 = vadd.xlane.f32.xlu0 %v443
    %v445 = vpop.xlane.xlu0 %444
    %v446 = vsel %vm442, %v441, 0.0
    %447 = vadd.xlane.f32.xlu0 %v446
    %v448 = vpop.xlane.xlu0 %447
    %v449 = vmax.f32 %v445, 1e-24
    %v450 = vmax.f32 %v448, 1e-24
    %v451 = vrsqrt.pop %v449
    %v452 = vrsqrt.pop %v450
    %v453 = vmul.f32 %v434, %v451
    %v454 = vmul.f32 %v437, %v452
    %v455 = vpack.c.bf16 %v454, %v453
    %v457 = vunpack.c.l.b16 %v455
    %v458 = vunpack.c.h.b16 %v455
    %v459 = vpack.c.b16 %v457, %v457
    %v460 = vpack.c.b16 %v458, %v458
    %vm463 = vcmask 257024
    %464 = vst.msk [vmem:[#allocation2] sm:$0xf] %vm463, %v459
    %465 = vst.msk [vmem:[#allocation2 + $0x4] sm:$0xf] %vm463, %v460
    // Predicated region
    $region30: #{tpu_custom_call.1} parent=1 // pred_check
      _
    $region31: #{tpu_custom_call.1} parent=1 // pred_check_branch
      %467 = sbr.rel (0) target = $region33
    $region32: #{tpu_custom_call.1} parent=1 // pred_region
      %s469 = ssub.s32 128, 128
      %470 = vsyncadd [#allocation3], %s469
      %s471 = sshll.u32 [#allocation2], 4
      %s472 = int_to_ptr.vmem [resolvable:$true] %s471
      %477 = dma.vmem_to_hbm [thread:$0]  %s472, 128, %s7, [#allocation3], 64, 64, 4
    $region33: #{tpu_custom_call.1} parent=1 // pred_fallthru
      _
    // Predicated region
    $region34: #{tpu_custom_call.1} parent=1 // pred_check
      _
    $region35: #{tpu_custom_call.1} parent=1 // pred_check_branch
      %479 = sbr.rel (0) target = $region37
    $region36: #{tpu_custom_call.1} parent=1 // pred_region
      %480 = dma.done [#allocation3], 128
    $region37: #{tpu_custom_call.1} parent=1 // pred_fallthru
      _
    %481 = vsyncpa [#allocation3], 1

</llo_original>
